<compile_context>
chip_gen: v5e
topology: v5e:2x2
jax: 0.10.0
libtpu: 0.0.40
codegen_flags: <defaults>
</compile_context>

<pallas_src>
import functools

import jax
import jax.numpy as jnp
from jax.experimental import pallas as pl
from jax.experimental.pallas import tpu as pltpu

FEAT_DIM = 1280      # hardcoded in the PyTorch module: nn.Linear(1280, num_classes)
LANE = 128
SUBLANE = 8


def _round_up(n, m):
    return (n + m - 1) // m * m


def _tpu_generation():
    """Best-effort TPU generation from device_kind; conservative (v5-like) default."""
    try:
        kind = jax.devices()[0].device_kind.lower()
    except Exception:
        return 5
    for gen in (7, 6, 5, 4):
        if f"v{gen}" in kind:
            return gen
    return 5


def _pick_batch_tile(batch, gen):
    """Rows per grid step.  v6e/v7x MXUs are 256 wide; v5e gains nothing past 128.
    On v7x, 256-row tiles are only used when the batch still yields >= 2 parallel tiles."""
    cap = 128
    if gen >= 6 and batch >= 512:
        cap = 256
    if batch <= cap:
        return batch, batch            # single tile == full batch dim -> no padding at all
    return cap, _round_up(batch, cap)


def _pick_hw_tile(hw, cap=2048):
    """Largest 128-multiple tile of the spatial axis that divides hw (<= cap)."""
    if hw % LANE != 0:
        # TODO(synk): ragged spatial sizes fall back to a single full-extent block.
        return hw
    t = max(LANE, min((cap // LANE) * LANE, hw))
    while hw % t != 0:
        t -= LANE
    return t


def classification_kernel(x_ref, w_enc_ref, b_enc_ref, w_cls_ref, b_cls_ref,
                          out_ref, pool_acc, *, inv_hw, elem_dtype):
    """One (batch tile, HW tile) grid step.

    x_ref     : (TB, C, THW)    f32   native-dtype image tile (cast in-register)
    w_enc_ref : (C, 1280)       bf16  encoder projection weight (transposed)
    b_enc_ref : (1, 1280)       f32
    w_cls_ref : (1280, NC_PAD)  bf16  classifier weight, zero-padded lane-dense
    b_cls_ref : (1, NC_PAD)     f32
    out_ref   : (TB, NC_PAD)    f32   resident across the HW grid axis
    pool_acc  : (TB, C)         f32   VMEM scratch: running spatial sum
    """
    k = pl.program_id(1)

    @pl.when(k == 0)
    def _():
        pool_acc[...] = jnp.zeros_like(pool_acc)

    # Partial spatial sum over this HW tile (cross-lane reduce, f32 accumulate).
    pool_acc[...] += jnp.sum(x_ref[...], axis=-1)

    @pl.when(k == pl.num_programs(1) - 1)
    def _():
        # Synthetic encoder: mean-pool + Linear(C, 1280) + GELU.
        pooled = (pool_acc[...] * inv_hw).astype(jnp.bfloat16)                 # (TB, C)
        feats = jnp.dot(pooled, w_enc_ref[...], preferred_element_type=jnp.float32)
        feats = feats + b_enc_ref[...]
        # TODO(synk): PyTorch nn.GELU defaults to the exact erf form; the tanh approximation
        #             is used here (the in-script reference uses the same form).
        feats = jax.nn.gelu(feats.astype(elem_dtype))
        # Classifier: nn.Linear(1280, num_classes), N padded to a lane-dense width.
        logits = jnp.dot(feats.astype(w_cls_ref.dtype), w_cls_ref[...],
                         preferred_element_type=jnp.float32)
        out_ref[...] = (logits + b_cls_ref[...]).astype(out_ref.dtype)


def make_classification_model(w_enc, b_enc, w_cls, b_cls, image_chw, *, hw_tile=None):
    """One-time weight preprocessing (done ONCE) + jitted Pallas forward."""
    C, H, W = image_chw
    hw = H * W
    feat_dim, num_classes = w_enc.shape[0], w_cls.shape[0]
    assert w_enc.shape == (feat_dim, C) and w_cls.shape == (num_classes, feat_dim)
    assert feat_dim == FEAT_DIM

    gen = _tpu_generation()
    # v6e/v7x VPU/EUP support bf16 elementwise; v5e does not -> keep f32 there.
    elem_dtype = jnp.bfloat16 if gen >= 6 else jnp.float32

    # ---- hoisted, one-time weight prep (NOT on the per-forward path) ---------------------
    w_enc_t = jnp.transpose(w_enc).astype(jnp.bfloat16)                   # (C, 1280)
    b_enc_r = b_enc.reshape(1, feat_dim).astype(jnp.float32)              # (1, 1280)

    nc_pad = _round_up(num_classes, LANE)                                 # lane-dense N
    w_cls_t = jnp.transpose(w_cls).astype(jnp.bfloat16)                   # (1280, NC)
    w_cls_p = jnp.pad(w_cls_t, ((0, 0), (0, nc_pad - num_classes)))       # (1280, NC_PAD)
    b_cls_p = jnp.pad(b_cls.astype(jnp.float32).reshape(1, num_classes),
                      ((0, 0), (0, nc_pad - num_classes)))                # (1, NC_PAD)

    thw = hw_tile if hw_tile is not None else _pick_hw_tile(hw)
    assert hw % thw == 0

    kernel = functools.partial(classification_kernel,
                               inv_hw=float(1.0 / hw), elem_dtype=elem_dtype)

    @jax.jit
    def forward(x_nchw):
        B = x_nchw.shape[0]
        assert x_nchw.shape[1:] == (C, H, W)

        tb, b_pad = _pick_batch_tile(B, gen)
        # Native f32 layout, reshape only (no cast).  Batch padded only when B > tile cap.
        x3d = x_nchw.reshape(B, C, hw)
        if b_pad != B:
            x3d = jnp.pad(x3d, ((0, b_pad - B), (0, 0), (0, 0)))

        grid = (b_pad // tb, hw // thw)

        # VMEM budget from actual buffer sizes (double-buffered pipeline) + headroom.
        vmem_bytes = (
            2 * tb * _round_up(C, SUBLANE) * thw * 4            # x tiles (f32)
            + 2 * _round_up(tb, SUBLANE) * nc_pad * 4           # out tiles (f32)
            + 2 * _round_up(C, 16) * feat_dim * 2               # encoder weight (bf16)
            + 2 * SUBLANE * feat_dim * 4                        # encoder bias
            + 2 * feat_dim * nc_pad * 2                         # classifier weight (bf16)
            + 2 * SUBLANE * nc_pad * 4                          # classifier bias
            + _round_up(tb, SUBLANE) * LANE * 4                 # pool_acc scratch
            + 4 * _round_up(tb, SUBLANE) * feat_dim * 4)        # epilogue temporaries
        vmem_limit = int(min(64 * 1024 * 1024, max(2 * vmem_bytes, 16 * 1024 * 1024)))

        cost = pl.CostEstimate(
            flops=(2 * b_pad * C * hw                           # spatial-sum adds
                   + 2 * b_pad * C * feat_dim
                   + 2 * b_pad * feat_dim * nc_pad),
            transcendentals=b_pad * feat_dim,
            bytes_accessed=(b_pad * C * hw * 4 + C * feat_dim * 2
                            + feat_dim * nc_pad * 2 + feat_dim * 4 + nc_pad * 4
                            + b_pad * nc_pad * 4))

        out = pl.pallas_call(
            kernel,
            out_shape=jax.ShapeDtypeStruct((b_pad, nc_pad), jnp.float32),
            grid_spec=pltpu.PrefetchScalarGridSpec(
                num_scalar_prefetch=0,
                grid=grid,
                in_specs=[
                    pl.BlockSpec((tb, C, thw), lambda i, k: (i, 0, k)),      # x tile
                    pl.BlockSpec((C, feat_dim), lambda i, k: (0, 0)),        # encoder weight
                    pl.BlockSpec((1, feat_dim), lambda i, k: (0, 0)),        # encoder bias
                    pl.BlockSpec((feat_dim, nc_pad), lambda i, k: (0, 0)),   # classifier weight
                    pl.BlockSpec((1, nc_pad), lambda i, k: (0, 0)),          # classifier bias
                ],
                out_specs=pl.BlockSpec((tb, nc_pad), lambda i, k: (i, 0)),
                scratch_shapes=[pltpu.VMEM((tb, C), jnp.float32)],
            ),
            compiler_params=pltpu.CompilerParams(
                dimension_semantics=("parallel", "arbitrary"),
                vmem_limit_bytes=vmem_limit),
            cost_estimate=cost,
        )(x3d, w_enc_t, b_enc_r, w_cls_p, b_cls_p)

        # Drop batch padding and the zero-padded logits columns (never leak them downstream).
        return out[:B, :num_classes]

    return forward


def reference_forward(x_nchw, w_enc, b_enc, w_cls, b_cls):
    pooled = jnp.mean(x_nchw.reshape(x_nchw.shape[0], x_nchw.shape[1], -1), axis=-1)
    feats = jax.nn.gelu(pooled @ w_enc.T + b_enc)
    return feats @ w_cls.T + b_cls


if __name__ == "__main__":
    key = jax.random.PRNGKey(0)
    k_x, k_we, k_be, k_wc, k_bc = jax.random.split(key, 5)

    B, C, H, W = 2, 4, 16, 16
    NUM_CLASSES = 16         # small synthetic class count

    x = jax.random.normal(k_x, (B, C, H, W), dtype=jnp.float32)
    # Deterministic synthetic parameters (PyTorch (out, in) convention).
    w_enc = jax.random.normal(k_we, (FEAT_DIM, C), dtype=jnp.float32) * 0.05
    b_enc = jax.random.normal(k_be, (FEAT_DIM,), dtype=jnp.float32) * 0.01
    w_cls = jax.random.normal(k_wc, (NUM_CLASSES, FEAT_DIM), dtype=jnp.float32) * 0.02
    b_cls = jax.random.normal(k_bc, (NUM_CLASSES,), dtype=jnp.float32) * 0.01

    forward = make_classification_model(w_enc, b_enc, w_cls, b_cls, (C, H, W))
    logits = jax.block_until_ready(forward(x))
    ref = reference_forward(x, w_enc, b_enc, w_cls, b_cls)
    assert logits.shape == (B, NUM_CLASSES)
    assert jnp.allclose(logits, ref, atol=2e-3, rtol=2e-2), "mismatch vs reference"

    # Also exercise the HW-tiled accumulation path (k grid axis > 1) at a small shape.
    forward_tiled = make_classification_model(w_enc, b_enc, w_cls, b_cls, (C, H, W),
                                              hw_tile=128)
    x2 = jax.random.normal(jax.random.PRNGKey(1), (4, C, H, W), dtype=jnp.float32)
    logits2 = jax.block_until_ready(forward_tiled(x2))
    ref2 = reference_forward(x2, w_enc, b_enc, w_cls, b_cls)
    assert logits2.shape == (4, NUM_CLASSES)
    assert jnp.allclose(logits2, ref2, atol=2e-3, rtol=2e-2), "mismatch (tiled HW path)"

    print("KERNEL_OK")
</pallas_src>

<mosaic_0001>
module attributes {stable_mosaic.version = 11 : i64} {
  func.func @classification_kernel(%arg0: i32, %arg1: i32, %arg2: memref<2x4x256xf32, #tpu.memory_space<vmem>>, %arg3: memref<4x1280xbf16, #tpu.memory_space<vmem>>, %arg4: memref<1x1280xf32, #tpu.memory_space<vmem>>, %arg5: memref<1280x128xbf16, #tpu.memory_space<vmem>>, %arg6: memref<1x128xf32, #tpu.memory_space<vmem>>, %arg7: memref<2x128xf32, #tpu.memory_space<vmem>>, %arg8: memref<2x4xf32, #tpu.memory_space<vmem>>) attributes {dimension_semantics = [#tpu.dimension_semantics<parallel>, #tpu.dimension_semantics<arbitrary>], iteration_bounds = array<i64: 1, 1>, scalar_prefetch = 0 : i64, scratch_operands = 1 : i64, tpu.core_type = #tpu.core_type<tc>, window_params = [{transform_indices = @transform_0, window_bounds = array<i64: 2, 4, 256>}, {pipeline_mode = #tpu.pipeline_mode<synchronous>, transform_indices = @transform_1, window_bounds = array<i64: 4, 1280>}, {pipeline_mode = #tpu.pipeline_mode<synchronous>, transform_indices = @transform_2, window_bounds = array<i64: 1, 1280>}, {pipeline_mode = #tpu.pipeline_mode<synchronous>, transform_indices = @transform_3, window_bounds = array<i64: 1280, 128>}, {pipeline_mode = #tpu.pipeline_mode<synchronous>, transform_indices = @transform_4, window_bounds = array<i64: 1, 128>}, {transform_indices = @transform_5, window_bounds = array<i64: 2, 128>}]} {
    %c0_i32 = arith.constant 0 : i32
    %0 = arith.cmpi eq, %arg1, %c0_i32 : i32
    %1 = arith.extui %0 : i1 to i32
    %c0_i32_0 = arith.constant 0 : i32
    %2 = arith.cmpi ne, %1, %c0_i32_0 : i32
    scf.if %2 {
      %cst_9 = arith.constant 0.000000e+00 : f32
      %11 = vector.broadcast %cst_9 : f32 to vector<2x4xf32>
      %c0_10 = arith.constant 0 : index
      %c0_11 = arith.constant 0 : index
      %12 = vector.load %arg8[%c0_10, %c0_11] : memref<2x4xf32, #tpu.memory_space<vmem>>, vector<2x4xf32>
      tpu.vector_store %arg8[%c0_10, %c0_11], %11 {strides = array<i32>} : memref<2x4xf32, #tpu.memory_space<vmem>>, vector<2x4xf32>,
    } else {
    }
    %c0 = arith.constant 0 : index
    %c0_1 = arith.constant 0 : index
    %3 = vector.load %arg8[%c0, %c0_1] : memref<2x4xf32, #tpu.memory_space<vmem>>, vector<2x4xf32>
    %c0_2 = arith.constant 0 : index
    %c0_3 = arith.constant 0 : index
    %c0_4 = arith.constant 0 : index
    %4 = vector.load %arg2[%c0_2, %c0_3, %c0_4] : memref<2x4x256xf32, #tpu.memory_space<vmem>>, vector<2x4x256xf32>
    %cst = arith.constant dense<0.000000e+00> : vector<2x4xf32>
    %5 = vector.multi_reduction <add>, %4, %cst [2] : vector<2x4x256xf32> to vector<2x4xf32>
    %6 = arith.addf %3, %5 : vector<2x4xf32>
    %c0_5 = arith.constant 0 : index
    %c0_6 = arith.constant 0 : index
    %7 = vector.load %arg8[%c0_5, %c0_6] : memref<2x4xf32, #tpu.memory_space<vmem>>, vector<2x4xf32>
    tpu.vector_store %arg8[%c0_5, %c0_6], %6 {strides = array<i32>} : memref<2x4xf32, #tpu.memory_space<vmem>>, vector<2x4xf32>,
    %c0_i32_7 = arith.constant 0 : i32
    %8 = arith.cmpi eq, %arg1, %c0_i32_7 : i32
    %9 = arith.extui %8 : i1 to i32
    %c0_i32_8 = arith.constant 0 : i32
    %10 = arith.cmpi ne, %9, %c0_i32_8 : i32
    scf.if %10 {
      %c0_9 = arith.constant 0 : index
      %c0_10 = arith.constant 0 : index
      %11 = vector.load %arg8[%c0_9, %c0_10] : memref<2x4xf32, #tpu.memory_space<vmem>>, vector<2x4xf32>
      %cst_11 = arith.constant 3.906250e-03 : f32
      %12 = vector.broadcast %cst_11 : f32 to vector<2x4xf32>
      %13 = arith.mulf %11, %12 : vector<2x4xf32>
      %14 = arith.truncf %13 : vector<2x4xf32> to vector<2x4xbf16>
      %c0_12 = arith.constant 0 : index
      %c0_13 = arith.constant 0 : index
      %15 = vector.load %arg3[%c0_12, %c0_13] : memref<4x1280xbf16, #tpu.memory_space<vmem>>, vector<4x1280xbf16>
      %cst_14 = arith.constant dense<0.000000e+00> : vector<2x1280xf32>
      %16 = tpu.matmul %14, %15, %cst_14 {dimension_numbers = #tpu.dot_dimension_numbers<[1], [0], [0], [1], [0, 0, 1, 1], [], []>} : vector<2x4xbf16>, vector<4x1280xbf16>, vector<2x1280xf32> -> vector<2x1280xf32>
      %c0_15 = arith.constant 0 : index
      %c0_16 = arith.constant 0 : index
      %17 = vector.load %arg4[%c0_15, %c0_16] : memref<1x1280xf32, #tpu.memory_space<vmem>>, vector<1x1280xf32>
      %18 = vector.broadcast %17 : vector<1x1280xf32> to vector<2x1280xf32>
      %19 = arith.addf %16, %18 : vector<2x1280xf32>
      %20 = arith.mulf %19, %19 : vector<2x1280xf32>
      %21 = arith.mulf %19, %20 : vector<2x1280xf32>
      %cst_17 = arith.constant 4.471500e-02 : f32
      %22 = vector.broadcast %cst_17 : f32 to vector<2x1280xf32>
      %23 = arith.mulf %22, %21 : vector<2x1280xf32>
      %24 = arith.addf %19, %23 : vector<2x1280xf32>
      %cst_18 = arith.constant 0.797884583 : f32
      %25 = vector.broadcast %cst_18 : f32 to vector<2x1280xf32>
      %26 = arith.mulf %25, %24 : vector<2x1280xf32>
      %27 = math.tanh %26 : vector<2x1280xf32>
      %cst_19 = arith.constant 1.000000e+00 : f32
      %28 = vector.broadcast %cst_19 : f32 to vector<2x1280xf32>
      %29 = arith.addf %28, %27 : vector<2x1280xf32>
      %cst_20 = arith.constant 5.000000e-01 : f32
      %30 = vector.broadcast %cst_20 : f32 to vector<2x1280xf32>
      %31 = arith.mulf %30, %29 : vector<2x1280xf32>
      %32 = arith.mulf %19, %31 : vector<2x1280xf32>
      %33 = arith.truncf %32 : vector<2x1280xf32> to vector<2x1280xbf16>
      %c0_21 = arith.constant 0 : index
      %c0_22 = arith.constant 0 : index
      %34 = vector.load %arg5[%c0_21, %c0_22] : memref<1280x128xbf16, #tpu.memory_space<vmem>>, vector<1280x128xbf16>
      %cst_23 = arith.constant dense<0.000000e+00> : vector<2x128xf32>
      %35 = tpu.matmul %33, %34, %cst_23 {dimension_numbers = #tpu.dot_dimension_numbers<[1], [0], [0], [1], [0, 0, 1, 1], [], []>} : vector<2x1280xbf16>, vector<1280x128xbf16>, vector<2x128xf32> -> vector<2x128xf32>
      %c0_24 = arith.constant 0 : index
      %c0_25 = arith.constant 0 : index
      %36 = vector.load %arg6[%c0_24, %c0_25] : memref<1x128xf32, #tpu.memory_space<vmem>>, vector<1x128xf32>
      %37 = vector.broadcast %36 : vector<1x128xf32> to vector<2x128xf32>
      %38 = arith.addf %35, %37 : vector<2x128xf32>
      %c0_26 = arith.constant 0 : index
      %c0_27 = arith.constant 0 : index
      %39 = vector.load %arg7[%c0_26, %c0_27] : memref<2x128xf32, #tpu.memory_space<vmem>>, vector<2x128xf32>
      tpu.vector_store %arg7[%c0_26, %c0_27], %38 {strides = array<i32>} : memref<2x128xf32, #tpu.memory_space<vmem>>, vector<2x128xf32>,
    } else {
    }
    return
  }
  func.func @transform_0(%arg0: i32, %arg1: i32) -> (i32, i32, i32) {
    %c0_i32 = arith.constant 0 : i32
    %c0_i32_0 = arith.constant 0 : i32
    return %arg0, %c0_i32, %arg1 : i32, i32, i32
  }
  func.func @transform_1(%arg0: i32, %arg1: i32) -> (i32, i32) {
    %c0_i32 = arith.constant 0 : i32
    %c0_i32_0 = arith.constant 0 : i32
    %c0_i32_1 = arith.constant 0 : i32
    return %c0_i32, %c0_i32_0 : i32, i32
  }
  func.func @transform_2(%arg0: i32, %arg1: i32) -> (i32, i32) {
    %c0_i32 = arith.constant 0 : i32
    %c0_i32_0 = arith.constant 0 : i32
    %c0_i32_1 = arith.constant 0 : i32
    return %c0_i32, %c0_i32_0 : i32, i32
  }
  func.func @transform_3(%arg0: i32, %arg1: i32) -> (i32, i32) {
    %c0_i32 = arith.constant 0 : i32
    %c0_i32_0 = arith.constant 0 : i32
    %c0_i32_1 = arith.constant 0 : i32
    return %c0_i32, %c0_i32_0 : i32, i32
  }
  func.func @transform_4(%arg0: i32, %arg1: i32) -> (i32, i32) {
    %c0_i32 = arith.constant 0 : i32
    %c0_i32_0 = arith.constant 0 : i32
    %c0_i32_1 = arith.constant 0 : i32
    return %c0_i32, %c0_i32_0 : i32, i32
  }
  func.func @transform_5(%arg0: i32, %arg1: i32) -> (i32, i32) {
    %c0_i32 = arith.constant 0 : i32
    %c0_i32_0 = arith.constant 0 : i32
    return %arg0, %c0_i32 : i32, i32
  }
}

</mosaic_0001>

<llo_original>
// kernel: forward.1
$region0: #{forward.1}
  #allocation0 [shape = 'u32[]', space=smem, size = 0x4, offset = 0x4, fixed_abs, tag = 'smem constant byte address 0x4 - core index']
  #allocation1 [shape = 'u32[72,128]{1,0:T(1,128)}', space=vmem, size = 0x9000, scoped, tag = 'internal scratch']
  #allocation2 [shape = 'f32[2,4]{1,0:T(2,128)}', space=vmem, size = 0x400, scoped, tag = 'scratch operand']
  %s0 = inlined_call_operand.vmem [shape: f32[2,4,256], index: 0, kind: input, shape index: {}]
  %s1 = inlined_call_operand.vmem [shape: bf16[4,1280], index: 1, kind: input, shape index: {}]
  %s2 = inlined_call_operand.vmem [shape: f32[1,1280], index: 2, kind: input, shape index: {}]
  %s3 = inlined_call_operand.hbm [shape: bf16[1280,128], index: 3, kind: input, shape index: {}]
  %s4 = inlined_call_operand.vmem [shape: f32[1,128], index: 4, kind: input, shape index: {}]
  %s5 = inlined_call_operand.hbm [shape: f32[2,128], index: 5, kind: output, shape index: {}]
  %s6 = sld [smem:[#allocation0]]
  $region42: #{forward.1} parent=0
    _
  %s8 = ssub.s32 1, %s6
  %s9 = scalar_select 0, %s8, %s6
  $region1: #{forward.1} parent=0
    #allocation3 [shape = 'u8[327680]{0}', space=vmem, size = 0x50000, scoped, tag = 'input window, operand 3, single buffered']
    #allocation4 [shape = 's32[1]{0}', space=sflag, size = 0x4, scoped, tag = 'scoped memory for forward.1']
    #allocation5 [shape = 's32[1]{0}', space=sflag, size = 0x4, scoped, tag = 'scoped memory for forward.1']
    #allocation6 [shape = 'u8[1024]{0}', space=vmem, size = 0x400, scoped, tag = 'output window, operand 0, single buffered']
    %10 = vsyncpa [#allocation4], 0
    %11 = vsyncpa [#allocation5], 0
    // Predicated region
    $region2: #{forward.1} parent=1 // pred_check
      _
    $region3: #{forward.1} parent=1 // pred_check_branch
      %13 = sbr.rel (0) target = $region5
    $region4: #{forward.1} parent=1 // pred_region
      _
    $region5: #{forward.1} parent=1 // pred_fallthru
      _
    // Predicated region
    $region6: #{forward.1} parent=1 // pred_check
      _
    $region7: #{forward.1} parent=1 // pred_check_branch
      %15 = sbr.rel (0) target = $region9
    $region8: #{forward.1} parent=1 // pred_region
      _
    $region9: #{forward.1} parent=1 // pred_fallthru
      _
    // Predicated region
    $region10: #{forward.1} parent=1 // pred_check
      _
    $region11: #{forward.1} parent=1 // pred_check_branch
      %17 = sbr.rel (0) target = $region13
    $region12: #{forward.1} parent=1 // pred_region
      _
    $region13: #{forward.1} parent=1 // pred_fallthru
      _
    // Predicated region
    $region14: #{forward.1} parent=1 // pred_check
      _
    $region15: #{forward.1} parent=1 // pred_check_branch
      %19 = sbr.rel (0) target = $region17
    $region16: #{forward.1} parent=1 // pred_region
      %21 = vsyncadd [#allocation4], 0
      %s22 = sshll.u32 %s3, 4
      %s23 = int_to_ptr.hbm [resolvable:$true] %s22
      %s24 = sshll.u32 [#allocation3], 4
      %s25 = int_to_ptr.vmem [resolvable:$true] %s24
      %30 = dma.hbm_to_vmem [thread:$0]  %s23, 10240, %s25, [#allocation4], 64, 64, 4
    $region17: #{forward.1} parent=1 // pred_fallthru
      _
    // Predicated region
    $region18: #{forward.1} parent=1 // pred_check
      _
    $region19: #{forward.1} parent=1 // pred_check_branch
      %32 = sbr.rel (0) target = $region21
    $region20: #{forward.1} parent=1 // pred_region
      _
    $region21: #{forward.1} parent=1 // pred_fallthru
      _
    // Predicated region
    $region22: #{forward.1} parent=1 // pred_check
      _
    $region23: #{forward.1} parent=1 // pred_check_branch
      %34 = sbr.rel (0) target = $region25
    $region24: #{forward.1} parent=1 // pred_region
      %36 = dma.done [#allocation4], 10240
    $region25: #{forward.1} parent=1 // pred_fallthru
      _
    %p38 = scmp.eq.s32.totalorder 0, 0
    // Predicated region
    $region26: #{forward.1} parent=1 // pred_check
      %p39 = pneg %p38
    $region27: #{forward.1} parent=1 // pred_check_branch
      %41 = sbr.rel (%p39) target = $region29
    $region28: #{forward.1} parent=1 // pred_region
      %vm42 = vcmask 25600
      %43 = vst.msk [vmem:[#allocation2] sm:$0x3] %vm42, 0.0
    $region29: #{forward.1} parent=1 // pred_fallthru
      _
    %v44 = vld [vmem:[#allocation2] sm:$0x3]
    %v45 = vld [vmem:[%s0] sm:$0xff]
    %v46 = vld [vmem:[%s0 + $0x8] sm:$0xff]
    %49 = vst [vmem:[#allocation1] ss:$2 sm:$0xff] %v45
    %v50 = vld.sshfl [vmem:[#allocation1] sm:$0xff pattern:$0x75316420]
    %v51 = vld.sshfl [vmem:[#allocation1 + $0x8] sm:$0xff pattern:$0x75316420]
    %s52 = scalar_lea.vmem [#allocation1], 16
    %53 = vst [vmem:[%s52] ss:$2 sm:$0xff] %v46
    %v54 = vld.sshfl [vmem:[#allocation1 + $0x10] sm:$0xff pattern:$0x75316420]
    %v55 = vld.sshfl [vmem:[#allocation1 + $0x18] sm:$0xff pattern:$0x75316420]
    %vm60 = vcmask 1043456
    %v61 = vsel %vm60, %v50, 0.0
    %v62 = vsel %vm60, %v51, 0.0
    %v63 = vadd.f32 %v61, %v62
    %64 = vadd.xlane.f32.xlu0 %v63
    %v65 = vpop.xlane.xlu0 %64
    %v66 = vsel %vm60, %v54, 0.0
    %v67 = vsel %vm60, %v55, 0.0
    %v68 = vadd.f32 %v66, %v67
    %69 = vadd.xlane.f32.xlu0 %v68
    %v70 = vpop.xlane.xlu0 %69
    %v73 = vlaneseq
    %v74 = vand.u32 %v73, 127
    %v75 = vperm.slane %v65, %v74
    %v76 = vperm.slane %v70, %v74
    %vm77 = vcmask 1041409
    %v78 = vsel %vm77, %v76, %v75
    %v80 = vadd.f32 %v44, %v78
    %vm81 = vcmask 25600
    %82 = vst.msk [vmem:[#allocation2] sm:$0x3] %vm81, %v80
    // Predicated region
    $region30: #{forward.1} parent=1 // pred_check
      %p83 = pneg %p38
    $region31: #{forward.1} parent=1 // pred_check_branch
      %85 = sbr.rel (%p83) target = $region33
    $region32: #{forward.1} parent=1 // pred_region
      %v86 = vld [vmem:[#allocation2] sm:$0x3]
      %v87 = vmul.f32 %v86, 0.00390625
      %v88 = vpack.c.bf16 %v87, %v87
      %v89 = vld [vmem:[%s1] sm:$0xff]
      %v90 = vld [vmem:[%s1 + $0x8] sm:$0xff]
      %v91 = vld [vmem:[%s1 + $0x10] sm:$0xf]
      %v92 = vld [vmem:[%s2] sm:$0xff]
      %v93 = vld [vmem:[%s2 + $0x8] sm:$0x3]
      %v96 = vperm.slane %v92, 0
      %v97 = vperm.slane %v92, 1
      %v98 = vperm.slane %v92, 2
      %v99 = vperm.slane %v92, 3
      %v100 = vperm.slane %v92, 4
      %v101 = vperm.slane %v92, 5
      %v102 = vperm.slane %v92, 6
      %v103 = vperm.slane %v92, 7
      %v104 = vperm.slane %v93, 0
      %v105 = vperm.slane %v93, 1
      %117 = vst [vmem:[#allocation1] ss:$4 sm:$0xff] %v89
      %s119 = scalar_lea.vmem [#allocation1], 32
      %120 = vst [vmem:[%s119] ss:$4 sm:$0xff] %v90
      %v121 = vld.sshfl [vmem:[#allocation1] sm:$0xff pattern:$0x73625140]
      %v122 = vld.sshfl [vmem:[#allocation1 + $0x8] sm:$0xff pattern:$0x73625140]
      %v123 = vld.sshfl [vmem:[#allocation1 + $0x10] sm:$0xff pattern:$0x73625140]
      %v124 = vld.sshfl [vmem:[#allocation1 + $0x18] sm:$0xff pattern:$0x73625140]
      %v125 = vld.sshfl [vmem:[#allocation1 + $0x20] sm:$0xff pattern:$0x73625140]
      %v126 = vld.sshfl [vmem:[#allocation1 + $0x28] sm:$0xff pattern:$0x73625140]
      %v127 = vld.sshfl [vmem:[#allocation1 + $0x30] sm:$0xff pattern:$0x73625140]
      %v128 = vld.sshfl [vmem:[#allocation1 + $0x38] sm:$0xff pattern:$0x73625140]
      %130 = vst [vmem:[#allocation1] ss:$4 sm:$0xff] %v91
      %v131 = vld.sshfl [vmem:[#allocation1] sm:$0xff pattern:$0x73625140]
      %v132 = vld.sshfl [vmem:[#allocation1 + $0x8] sm:$0xff pattern:$0x73625140]
      %vm133 = vcmask 31744
      %v135 = vsel %vm133, %v88, 0
      %vm137 = vcmask 1041408
      %v138 = vsel %vm137, %v121, 0
      %v140 = vsel %vm137, %v122, 0
      %v142 = vsel %vm137, %v123, 0
      %v144 = vsel %vm137, %v124, 0
      %v146 = vsel %vm137, %v125, 0
      %v148 = vsel %vm137, %v126, 0
      %v150 = vsel %vm137, %v127, 0
      %v152 = vsel %vm137, %v128, 0
      %v154 = vsel %vm137, %v131, 0
      %v156 = vsel %vm137, %v132, 0
      %158 = vmatpush.bf16.msra.mxu0 0
      %159 = vmatpush.bf16.msra.mxu0 0
      %160 = vmatpush.bf16.msra.mxu0 0
      %161 = vmatpush.bf16.msra.mxu0 0
      %162 = vmatpush.bf16.msra.mxu0 0
      %163 = vmatpush.bf16.msra.mxu0 0
      %164 = vmatpush.bf16.msra.mxu0 0
      %165 = vmatpush.bf16.msra.mxu0 %v138
      %166 = vmatmul.bf16.gmra.mxu0 %v135
      %v167 = vpop.f32.mrf.mxu0
      %v168 = vadd.f32 %v96, %v167
      %v169 = vpop.f32.mrf.mxu0
      %170 = vdwg.mxu0
      %171 = vmatpush.bf16.msra.mxu0 0
      %172 = vmatpush.bf16.msra.mxu0 0
      %173 = vmatpush.bf16.msra.mxu0 0
      %174 = vmatpush.bf16.msra.mxu0 0
      %175 = vmatpush.bf16.msra.mxu0 0
      %176 = vmatpush.bf16.msra.mxu0 0
      %177 = vmatpush.bf16.msra.mxu0 0
      %178 = vmatpush.bf16.msra.mxu0 %v140
      %179 = vmatmul.bf16.gmra.mxu0 %v135
      %v180 = vpop.f32.mrf.mxu0
      %v181 = vadd.f32 %v97, %v180
      %v182 = vpop.f32.mrf.mxu0
      %183 = vdwg.mxu0
      %184 = vmatpush.bf16.msra.mxu0 0
      %185 = vmatpush.bf16.msra.mxu0 0
      %186 = vmatpush.bf16.msra.mxu0 0
      %187 = vmatpush.bf16.msra.mxu0 0
      %188 = vmatpush.bf16.msra.mxu0 0
      %189 = vmatpush.bf16.msra.mxu0 0
      %190 = vmatpush.bf16.msra.mxu0 0
      %191 = vmatpush.bf16.msra.mxu0 %v142
      %192 = vmatmul.bf16.gmra.mxu0 %v135
      %v193 = vpop.f32.mrf.mxu0
      %v194 = vadd.f32 %v98, %v193
      %v195 = vpop.f32.mrf.mxu0
      %196 = vdwg.mxu0
      %197 = vmatpush.bf16.msra.mxu0 0
      %198 = vmatpush.bf16.msra.mxu0 0
      %199 = vmatpush.bf16.msra.mxu0 0
      %200 = vmatpush.bf16.msra.mxu0 0
      %201 = vmatpush.bf16.msra.mxu0 0
      %202 = vmatpush.bf16.msra.mxu0 0
      %203 = vmatpush.bf16.msra.mxu0 0
      %204 = vmatpush.bf16.msra.mxu0 %v144
      %205 = vmatmul.bf16.gmra.mxu0 %v135
      %v206 = vpop.f32.mrf.mxu0
      %v207 = vadd.f32 %v99, %v206
      %v208 = vpop.f32.mrf.mxu0
      %209 = vdwg.mxu0
      %210 = vmatpush.bf16.msra.mxu0 0
      %211 = vmatpush.bf16.msra.mxu0 0
      %212 = vmatpush.bf16.msra.mxu0 0
      %213 = vmatpush.bf16.msra.mxu0 0
      %214 = vmatpush.bf16.msra.mxu0 0
      %215 = vmatpush.bf16.msra.mxu0 0
      %216 = vmatpush.bf16.msra.mxu0 0
      %217 = vmatpush.bf16.msra.mxu0 %v146
      %218 = vmatmul.bf16.gmra.mxu0 %v135
      %v219 = vpop.f32.mrf.mxu0
      %v220 = vadd.f32 %v100, %v219
      %v221 = vpop.f32.mrf.mxu0
      %222 = vdwg.mxu0
      %223 = vmatpush.bf16.msra.mxu0 0
      %224 = vmatpush.bf16.msra.mxu0 0
      %225 = vmatpush.bf16.msra.mxu0 0
      %226 = vmatpush.bf16.msra.mxu0 0
      %227 = vmatpush.bf16.msra.mxu0 0
      %228 = vmatpush.bf16.msra.mxu0 0
      %229 = vmatpush.bf16.msra.mxu0 0
      %230 = vmatpush.bf16.msra.mxu0 %v148
      %231 = vmatmul.bf16.gmra.mxu0 %v135
      %v232 = vpop.f32.mrf.mxu0
      %v233 = vadd.f32 %v101, %v232
      %v234 = vpop.f32.mrf.mxu0
      %235 = vdwg.mxu0
      %236 = vmatpush.bf16.msra.mxu0 0
      %237 = vmatpush.bf16.msra.mxu0 0
      %238 = vmatpush.bf16.msra.mxu0 0
      %239 = vmatpush.bf16.msra.mxu0 0
      %240 = vmatpush.bf16.msra.mxu0 0
      %241 = vmatpush.bf16.msra.mxu0 0
      %242 = vmatpush.bf16.msra.mxu0 0
      %243 = vmatpush.bf16.msra.mxu0 %v150
      %244 = vmatmul.bf16.gmra.mxu0 %v135
      %v245 = vpop.f32.mrf.mxu0
      %v246 = vadd.f32 %v102, %v245
      %v247 = vpop.f32.mrf.mxu0
      %248 = vdwg.mxu0
      %249 = vmatpush.bf16.msra.mxu0 0
      %250 = vmatpush.bf16.msra.mxu0 0
      %251 = vmatpush.bf16.msra.mxu0 0
      %252 = vmatpush.bf16.msra.mxu0 0
      %253 = vmatpush.bf16.msra.mxu0 0
      %254 = vmatpush.bf16.msra.mxu0 0
      %255 = vmatpush.bf16.msra.mxu0 0
      %256 = vmatpush.bf16.msra.mxu0 %v152
      %257 = vmatmul.bf16.gmra.mxu0 %v135
      %v258 = vpop.f32.mrf.mxu0
      %v259 = vadd.f32 %v103, %v258
      %v260 = vpop.f32.mrf.mxu0
      %261 = vdwg.mxu0
      %262 = vmatpush.bf16.msra.mxu0 0
      %263 = vmatpush.bf16.msra.mxu0 0
      %264 = vmatpush.bf16.msra.mxu0 0
      %265 = vmatpush.bf16.msra.mxu0 0
      %266 = vmatpush.bf16.msra.mxu0 0
      %267 = vmatpush.bf16.msra.mxu0 0
      %268 = vmatpush.bf16.msra.mxu0 0
      %269 = vmatpush.bf16.msra.mxu0 %v154
      %270 = vmatmul.bf16.gmra.mxu0 %v135
      %v271 = vpop.f32.mrf.mxu0
      %v272 = vadd.f32 %v104, %v271
      %v273 = vpop.f32.mrf.mxu0
      %274 = vdwg.mxu0
      %275 = vmatpush.bf16.msra.mxu0 0
      %276 = vmatpush.bf16.msra.mxu0 0
      %277 = vmatpush.bf16.msra.mxu0 0
      %278 = vmatpush.bf16.msra.mxu0 0
      %279 = vmatpush.bf16.msra.mxu0 0
      %280 = vmatpush.bf16.msra.mxu0 0
      %281 = vmatpush.bf16.msra.mxu0 0
      %282 = vmatpush.bf16.msra.mxu0 %v156
      %283 = vmatmul.bf16.gmra.mxu0 %v135
      %v284 = vpop.f32.mrf.mxu0
      %v285 = vadd.f32 %v105, %v284
      %v286 = vpop.f32.mrf.mxu0
      %287 = vdwg.mxu0
      %v288 = vmul.f32 %v168, %v168
      %v289 = vmul.f32 %v181, %v181
      %v290 = vmul.f32 %v194, %v194
      %v291 = vmul.f32 %v207, %v207
      %v292 = vmul.f32 %v220, %v220
      %v293 = vmul.f32 %v233, %v233
      %v294 = vmul.f32 %v246, %v246
      %v295 = vmul.f32 %v259, %v259
      %v296 = vmul.f32 %v272, %v272
      %v297 = vmul.f32 %v285, %v285
      %v298 = vmul.f32 %v168, %v288
      %v299 = vmul.f32 %v181, %v289
      %v300 = vmul.f32 %v194, %v290
      %v301 = vmul.f32 %v207, %v291
      %v302 = vmul.f32 %v220, %v292
      %v303 = vmul.f32 %v233, %v293
      %v304 = vmul.f32 %v246, %v294
      %v305 = vmul.f32 %v259, %v295
      %v306 = vmul.f32 %v272, %v296
      %v307 = vmul.f32 %v285, %v297
      %v308 = vmul.f32 %v298, 0.044715
      %v309 = vmul.f32 %v299, 0.044715
      %v310 = vmul.f32 %v300, 0.044715
      %v311 = vmul.f32 %v301, 0.044715
      %v312 = vmul.f32 %v302, 0.044715
      %v313 = vmul.f32 %v303, 0.044715
      %v314 = vmul.f32 %v304, 0.044715
      %v315 = vmul.f32 %v305, 0.044715
      %v316 = vmul.f32 %v306, 0.044715
      %v317 = vmul.f32 %v307, 0.044715
      %v318 = vadd.f32 %v168, %v308
      %v319 = vadd.f32 %v181, %v309
      %v320 = vadd.f32 %v194, %v310
      %v321 = vadd.f32 %v207, %v311
      %v322 = vadd.f32 %v220, %v312
      %v323 = vadd.f32 %v233, %v313
      %v324 = vadd.f32 %v246, %v314
      %v325 = vadd.f32 %v259, %v315
      %v326 = vadd.f32 %v272, %v316
      %v327 = vadd.f32 %v285, %v317
      %v328 = vmul.f32 %v318, 0.7978846
      %v329 = vmul.f32 %v319, 0.7978846
      %v330 = vmul.f32 %v320, 0.7978846
      %v331 = vmul.f32 %v321, 0.7978846
      %v332 = vmul.f32 %v322, 0.7978846
      %v333 = vmul.f32 %v323, 0.7978846
      %v334 = vmul.f32 %v324, 0.7978846
      %v335 = vmul.f32 %v325, 0.7978846
      %v336 = vmul.f32 %v326, 0.7978846
      %v337 = vmul.f32 %v327, 0.7978846
      %v338 = vtanh.pop %v328
      %v339 = vtanh.pop %v329
      %v340 = vtanh.pop %v330
      %v341 = vtanh.pop %v331
      %v342 = vtanh.pop %v332
      %v343 = vtanh.pop %v333
      %v344 = vtanh.pop %v334
      %v345 = vtanh.pop %v335
      %v346 = vtanh.pop %v336
      %v347 = vtanh.pop %v337
      %v348 = vadd.f32 %v338, 1.0
      %v349 = vadd.f32 %v339, 1.0
      %v350 = vadd.f32 %v340, 1.0
      %v351 = vadd.f32 %v341, 1.0
      %v352 = vadd.f32 %v342, 1.0
      %v353 = vadd.f32 %v343, 1.0
      %v354 = vadd.f32 %v344, 1.0
      %v355 = vadd.f32 %v345, 1.0
      %v356 = vadd.f32 %v346, 1.0
      %v357 = vadd.f32 %v347, 1.0
      %v358 = vmul.f32 %v348, 0.5
      %v359 = vmul.f32 %v349, 0.5
      %v360 = vmul.f32 %v350, 0.5
      %v361 = vmul.f32 %v351, 0.5
      %v362 = vmul.f32 %v352, 0.5
      %v363 = vmul.f32 %v353, 0.5
      %v364 = vmul.f32 %v354, 0.5
      %v365 = vmul.f32 %v355, 0.5
      %v366 = vmul.f32 %v356, 0.5
      %v367 = vmul.f32 %v357, 0.5
      %v368 = vmul.f32 %v168, %v358
      %v369 = vmul.f32 %v181, %v359
      %v370 = vmul.f32 %v194, %v360
      %v371 = vmul.f32 %v207, %v361
      %v372 = vmul.f32 %v220, %v362
      %v373 = vmul.f32 %v233, %v363
      %v374 = vmul.f32 %v246, %v364
      %v375 = vmul.f32 %v259, %v365
      %v376 = vmul.f32 %v272, %v366
      %v377 = vmul.f32 %v285, %v367
      %v378 = vpack.c.bf16 %v368, %v368
      %v379 = vpack.c.bf16 %v369, %v369
      %v380 = vpack.c.bf16 %v370, %v370
      %v381 = vpack.c.bf16 %v371, %v371
      %v382 = vpack.c.bf16 %v372, %v372
      %v383 = vpack.c.bf16 %v373, %v373
      %v384 = vpack.c.bf16 %v374, %v374
      %v385 = vpack.c.bf16 %v375, %v375
      %v386 = vpack.c.bf16 %v376, %v376
      %v387 = vpack.c.bf16 %v377, %v377
      %v388 = vld [vmem:[#allocation3] sm:$0xf]
      %v389 = vld [vmem:[#allocation3 + $0x4] sm:$0xf]
      %v390 = vld [vmem:[#allocation3 + $0x8] sm:$0xf]
      %v391 = vld [vmem:[#allocation3 + $0xc] sm:$0xf]
      %v392 = vld [vmem:[#allocation3 + $0x10] sm:$0xf]
      %v393 = vld [vmem:[#allocation3 + $0x14] sm:$0xf]
      %v394 = vld [vmem:[#allocation3 + $0x18] sm:$0xf]
      %v395 = vld [vmem:[#allocation3 + $0x1c] sm:$0xf]
      %v396 = vld [vmem:[#allocation3 + $0x20] sm:$0xf]
      %v397 = vld [vmem:[#allocation3 + $0x24] sm:$0xf]
      %v398 = vld [vmem:[#allocation3 + $0x28] sm:$0xf]
      %v399 = vld [vmem:[#allocation3 + $0x2c] sm:$0xf]
      %v400 = vld [vmem:[#allocation3 + $0x30] sm:$0xf]
      %v401 = vld [vmem:[#allocation3 + $0x34] sm:$0xf]
      %v402 = vld [vmem:[#allocation3 + $0x38] sm:$0xf]
      %v403 = vld [vmem:[#allocation3 + $0x3c] sm:$0xf]
      %v404 = vld [vmem:[#allocation3 + $0x40] sm:$0xf]
      %v405 = vld [vmem:[#allocation3 + $0x44] sm:$0xf]
      %v406 = vld [vmem:[#allocation3 + $0x48] sm:$0xf]
      %v407 = vld [vmem:[#allocation3 + $0x4c] sm:$0xf]
      %v408 = vld [vmem:[#allocation3 + $0x50] sm:$0xf]
      %v409 = vld [vmem:[#allocation3 + $0x54] sm:$0xf]
      %v410 = vld [vmem:[#allocation3 + $0x58] sm:$0xf]
      %v411 = vld [vmem:[#allocation3 + $0x5c] sm:$0xf]
      %v412 = vld [vmem:[#allocation3 + $0x60] sm:$0xf]
      %v413 = vld [vmem:[#allocation3 + $0x64] sm:$0xf]
      %v414 = vld [vmem:[#allocation3 + $0x68] sm:$0xf]
      %v415 = vld [vmem:[#allocation3 + $0x6c] sm:$0xf]
      %v416 = vld [vmem:[#allocation3 + $0x70] sm:$0xf]
      %v417 = vld [vmem:[#allocation3 + $0x74] sm:$0xf]
      %v418 = vld [vmem:[#allocation3 + $0x78] sm:$0xf]
      %v419 = vld [vmem:[#allocation3 + $0x7c] sm:$0xf]
      %v420 = vld [vmem:[#allocation3 + $0x80] sm:$0xf]
      %v421 = vld [vmem:[#allocation3 + $0x84] sm:$0xf]
      %v422 = vld [vmem:[#allocation3 + $0x88] sm:$0xf]
      %v423 = vld [vmem:[#allocation3 + $0x8c] sm:$0xf]
      %v424 = vld [vmem:[#allocation3 + $0x90] sm:$0xf]
      %v425 = vld [vmem:[#allocation3 + $0x94] sm:$0xf]
      %v426 = vld [vmem:[#allocation3 + $0x98] sm:$0xf]
      %v427 = vld [vmem:[#allocation3 + $0x9c] sm:$0xf]
      %v428 = vld [vmem:[#allocation3 + $0xa0] sm:$0xf]
      %v429 = vld [vmem:[#allocation3 + $0xa4] sm:$0xf]
      %v430 = vld [vmem:[#allocation3 + $0xa8] sm:$0xf]
      %v431 = vld [vmem:[#allocation3 + $0xac] sm:$0xf]
      %v432 = vld [vmem:[#allocation3 + $0xb0] sm:$0xf]
      %v433 = vld [vmem:[#allocation3 + $0xb4] sm:$0xf]
      %v434 = vld [vmem:[#allocation3 + $0xb8] sm:$0xf]
      %v435 = vld [vmem:[#allocation3 + $0xbc] sm:$0xf]
      %v436 = vld [vmem:[#allocation3 + $0xc0] sm:$0xf]
      %v437 = vld [vmem:[#allocation3 + $0xc4] sm:$0xf]
      %v438 = vld [vmem:[#allocation3 + $0xc8] sm:$0xf]
      %v439 = vld [vmem:[#allocation3 + $0xcc] sm:$0xf]
      %v440 = vld [vmem:[#allocation3 + $0xd0] sm:$0xf]
      %v441 = vld [vmem:[#allocation3 + $0xd4] sm:$0xf]
      %v442 = vld [vmem:[#allocation3 + $0xd8] sm:$0xf]
      %v443 = vld [vmem:[#allocation3 + $0xdc] sm:$0xf]
      %v444 = vld [vmem:[#allocation3 + $0xe0] sm:$0xf]
      %v445 = vld [vmem:[#allocation3 + $0xe4] sm:$0xf]
      %v446 = vld [vmem:[#allocation3 + $0xe8] sm:$0xf]
      %v447 = vld [vmem:[#allocation3 + $0xec] sm:$0xf]
      %v448 = vld [vmem:[#allocation3 + $0xf0] sm:$0xf]
      %v449 = vld [vmem:[#allocation3 + $0xf4] sm:$0xf]
      %v450 = vld [vmem:[#allocation3 + $0xf8] sm:$0xf]
      %v451 = vld [vmem:[#allocation3 + $0xfc] sm:$0xf]
      %v452 = vld [vmem:[#allocation3 + $0x100] sm:$0xf]
      %v453 = vld [vmem:[#allocation3 + $0x104] sm:$0xf]
      %v454 = vld [vmem:[#allocation3 + $0x108] sm:$0xf]
      %v455 = vld [vmem:[#allocation3 + $0x10c] sm:$0xf]
      %v456 = vld [vmem:[#allocation3 + $0x110] sm:$0xf]
      %v457 = vld [vmem:[#allocation3 + $0x114] sm:$0xf]
      %v458 = vld [vmem:[#allocation3 + $0x118] sm:$0xf]
      %v459 = vld [vmem:[#allocation3 + $0x11c] sm:$0xf]
      %v460 = vld [vmem:[#allocation3 + $0x120] sm:$0xf]
      %v461 = vld [vmem:[#allocation3 + $0x124] sm:$0xf]
      %v462 = vld [vmem:[#allocation3 + $0x128] sm:$0xf]
      %v463 = vld [vmem:[#allocation3 + $0x12c] sm:$0xf]
      %v464 = vld [vmem:[#allocation3 + $0x130] sm:$0xf]
      %v465 = vld [vmem:[#allocation3 + $0x134] sm:$0xf]
      %v466 = vld [vmem:[#allocation3 + $0x138] sm:$0xf]
      %v467 = vld [vmem:[#allocation3 + $0x13c] sm:$0xf]
      %v468 = vld [vmem:[#allocation3 + $0x140] sm:$0xf]
      %v469 = vld [vmem:[#allocation3 + $0x144] sm:$0xf]
      %v470 = vld [vmem:[#allocation3 + $0x148] sm:$0xf]
      %v471 = vld [vmem:[#allocation3 + $0x14c] sm:$0xf]
      %v472 = vld [vmem:[#allocation3 + $0x150] sm:$0xf]
      %v473 = vld [vmem:[#allocation3 + $0x154] sm:$0xf]
      %v474 = vld [vmem:[#allocation3 + $0x158] sm:$0xf]
      %v475 = vld [vmem:[#allocation3 + $0x15c] sm:$0xf]
      %v476 = vld [vmem:[#allocation3 + $0x160] sm:$0xf]
      %v477 = vld [vmem:[#allocation3 + $0x164] sm:$0xf]
      %v478 = vld [vmem:[#allocation3 + $0x168] sm:$0xf]
      %v479 = vld [vmem:[#allocation3 + $0x16c] sm:$0xf]
      %v480 = vld [vmem:[#allocation3 + $0x170] sm:$0xf]
      %v481 = vld [vmem:[#allocation3 + $0x174] sm:$0xf]
      %v482 = vld [vmem:[#allocation3 + $0x178] sm:$0xf]
      %v483 = vld [vmem:[#allocation3 + $0x17c] sm:$0xf]
      %v484 = vld [vmem:[#allocation3 + $0x180] sm:$0xf]
      %v485 = vld [vmem:[#allocation3 + $0x184] sm:$0xf]
      %v486 = vld [vmem:[#allocation3 + $0x188] sm:$0xf]
      %v487 = vld [vmem:[#allocation3 + $0x18c] sm:$0xf]
      %v488 = vld [vmem:[#allocation3 + $0x190] sm:$0xf]
      %v489 = vld [vmem:[#allocation3 + $0x194] sm:$0xf]
      %v490 = vld [vmem:[#allocation3 + $0x198] sm:$0xf]
      %v491 = vld [vmem:[#allocation3 + $0x19c] sm:$0xf]
      %v492 = vld [vmem:[#allocation3 + $0x1a0] sm:$0xf]
      %v493 = vld [vmem:[#allocation3 + $0x1a4] sm:$0xf]
      %v494 = vld [vmem:[#allocation3 + $0x1a8] sm:$0xf]
      %v495 = vld [vmem:[#allocation3 + $0x1ac] sm:$0xf]
      %v496 = vld [vmem:[#allocation3 + $0x1b0] sm:$0xf]
      %v497 = vld [vmem:[#allocation3 + $0x1b4] sm:$0xf]
      %v498 = vld [vmem:[#allocation3 + $0x1b8] sm:$0xf]
      %v499 = vld [vmem:[#allocation3 + $0x1bc] sm:$0xf]
      %v500 = vld [vmem:[#allocation3 + $0x1c0] sm:$0xf]
      %v501 = vld [vmem:[#allocation3 + $0x1c4] sm:$0xf]
      %v502 = vld [vmem:[#allocation3 + $0x1c8] sm:$0xf]
      %v503 = vld [vmem:[#allocation3 + $0x1cc] sm:$0xf]
      %v504 = vld [vmem:[#allocation3 + $0x1d0] sm:$0xf]
      %v505 = vld [vmem:[#allocation3 + $0x1d4] sm:$0xf]
      %v506 = vld [vmem:[#allocation3 + $0x1d8] sm:$0xf]
      %v507 = vld [vmem:[#allocation3 + $0x1dc] sm:$0xf]
      %v508 = vld [vmem:[#allocation3 + $0x1e0] sm:$0xf]
      %v509 = vld [vmem:[#allocation3 + $0x1e4] sm:$0xf]
      %v510 = vld [vmem:[#allocation3 + $0x1e8] sm:$0xf]
      %v511 = vld [vmem:[#allocation3 + $0x1ec] sm:$0xf]
      %v512 = vld [vmem:[#allocation3 + $0x1f0] sm:$0xf]
      %v513 = vld [vmem:[#allocation3 + $0x1f4] sm:$0xf]
      %v514 = vld [vmem:[#allocation3 + $0x1f8] sm:$0xf]
      %v515 = vld [vmem:[#allocation3 + $0x1fc] sm:$0xf]
      %v516 = vld [vmem:[#allocation3 + $0x200] sm:$0xf]
      %v517 = vld [vmem:[#allocation3 + $0x204] sm:$0xf]
      %v518 = vld [vmem:[#allocation3 + $0x208] sm:$0xf]
      %v519 = vld [vmem:[#allocation3 + $0x20c] sm:$0xf]
      %v520 = vld [vmem:[#allocation3 + $0x210] sm:$0xf]
      %v521 = vld [vmem:[#allocation3 + $0x214] sm:$0xf]
      %v522 = vld [vmem:[#allocation3 + $0x218] sm:$0xf]
      %v523 = vld [vmem:[#allocation3 + $0x21c] sm:$0xf]
      %v524 = vld [vmem:[#allocation3 + $0x220] sm:$0xf]
      %v525 = vld [vmem:[#allocation3 + $0x224] sm:$0xf]
      %v526 = vld [vmem:[#allocation3 + $0x228] sm:$0xf]
      %v527 = vld [vmem:[#allocation3 + $0x22c] sm:$0xf]
      %v528 = vld [vmem:[#allocation3 + $0x230] sm:$0xf]
      %v529 = vld [vmem:[#allocation3 + $0x234] sm:$0xf]
      %v530 = vld [vmem:[#allocation3 + $0x238] sm:$0xf]
      %v531 = vld [vmem:[#allocation3 + $0x23c] sm:$0xf]
      %v532 = vld [vmem:[#allocation3 + $0x240] sm:$0xf]
      %v533 = vld [vmem:[#allocation3 + $0x244] sm:$0xf]
      %v534 = vld [vmem:[#allocation3 + $0x248] sm:$0xf]
      %v535 = vld [vmem:[#allocation3 + $0x24c] sm:$0xf]
      %v536 = vld [vmem:[#allocation3 + $0x250] sm:$0xf]
      %v537 = vld [vmem:[#allocation3 + $0x254] sm:$0xf]
      %v538 = vld [vmem:[#allocation3 + $0x258] sm:$0xf]
      %v539 = vld [vmem:[#allocation3 + $0x25c] sm:$0xf]
      %v540 = vld [vmem:[#allocation3 + $0x260] sm:$0xf]
      %v541 = vld [vmem:[#allocation3 + $0x264] sm:$0xf]
      %v542 = vld [vmem:[#allocation3 + $0x268] sm:$0xf]
      %v543 = vld [vmem:[#allocation3 + $0x26c] sm:$0xf]
      %v544 = vld [vmem:[#allocation3 + $0x270] sm:$0xf]
      %v545 = vld [vmem:[#allocation3 + $0x274] sm:$0xf]
      %v546 = vld [vmem:[#allocation3 + $0x278] sm:$0xf]
      %v547 = vld [vmem:[#allocation3 + $0x27c] sm:$0xf]
      %v548 = vld [vmem:[%s4] sm:$0x1]
      %v550 = vperm.slane %v548, 0
      %v712 = vunpack.c.l.b16 %v388
      %v713 = vunpack.c.l.b16 %v389
      %v714 = vunpack.c.l.b16 %v390
      %v715 = vunpack.c.l.b16 %v391
      %v716 = vunpack.c.l.b16 %v392
      %v717 = vunpack.c.l.b16 %v393
      %v718 = vunpack.c.l.b16 %v394
      %v719 = vunpack.c.l.b16 %v395
      %v720 = vunpack.c.l.b16 %v396
      %v721 = vunpack.c.l.b16 %v397
      %v722 = vunpack.c.l.b16 %v398
      %v723 = vunpack.c.l.b16 %v399
      %v724 = vunpack.c.l.b16 %v400
      %v725 = vunpack.c.l.b16 %v401
      %v726 = vunpack.c.l.b16 %v402
      %v727 = vunpack.c.l.b16 %v403
      %v728 = vunpack.c.l.b16 %v404
      %v729 = vunpack.c.l.b16 %v405
      %v730 = vunpack.c.l.b16 %v406
      %v731 = vunpack.c.l.b16 %v407
      %v732 = vunpack.c.l.b16 %v408
      %v733 = vunpack.c.l.b16 %v409
      %v734 = vunpack.c.l.b16 %v410
      %v735 = vunpack.c.l.b16 %v411
      %v736 = vunpack.c.l.b16 %v412
      %v737 = vunpack.c.l.b16 %v413
      %v738 = vunpack.c.l.b16 %v414
      %v739 = vunpack.c.l.b16 %v415
      %v740 = vunpack.c.l.b16 %v416
      %v741 = vunpack.c.l.b16 %v417
      %v742 = vunpack.c.l.b16 %v418
      %v743 = vunpack.c.l.b16 %v419
      %v744 = vunpack.c.l.b16 %v420
      %v745 = vunpack.c.l.b16 %v421
      %v746 = vunpack.c.l.b16 %v422
      %v747 = vunpack.c.l.b16 %v423
      %v748 = vunpack.c.l.b16 %v424
      %v749 = vunpack.c.l.b16 %v425
      %v750 = vunpack.c.l.b16 %v426
      %v751 = vunpack.c.l.b16 %v427
      %v752 = vunpack.c.l.b16 %v428
      %v753 = vunpack.c.l.b16 %v429
      %v754 = vunpack.c.l.b16 %v430
      %v755 = vunpack.c.l.b16 %v431
      %v756 = vunpack.c.l.b16 %v432
      %v757 = vunpack.c.l.b16 %v433
      %v758 = vunpack.c.l.b16 %v434
      %v759 = vunpack.c.l.b16 %v435
      %v760 = vunpack.c.l.b16 %v436
      %v761 = vunpack.c.l.b16 %v437
      %v762 = vunpack.c.l.b16 %v438
      %v763 = vunpack.c.l.b16 %v439
      %v764 = vunpack.c.l.b16 %v440
      %v765 = vunpack.c.l.b16 %v441
      %v766 = vunpack.c.l.b16 %v442
      %v767 = vunpack.c.l.b16 %v443
      %v768 = vunpack.c.l.b16 %v444
      %v769 = vunpack.c.l.b16 %v445
      %v770 = vunpack.c.l.b16 %v446
      %v771 = vunpack.c.l.b16 %v447
      %v772 = vunpack.c.l.b16 %v448
      %v773 = vunpack.c.l.b16 %v449
      %v774 = vunpack.c.l.b16 %v450
      %v775 = vunpack.c.l.b16 %v451
      %v776 = vunpack.c.l.b16 %v452
      %v777 = vunpack.c.l.b16 %v453
      %v778 = vunpack.c.l.b16 %v454
      %v779 = vunpack.c.l.b16 %v455
      %v780 = vunpack.c.l.b16 %v456
      %v781 = vunpack.c.l.b16 %v457
      %v782 = vunpack.c.l.b16 %v458
      %v783 = vunpack.c.l.b16 %v459
      %v784 = vunpack.c.l.b16 %v460
      %v785 = vunpack.c.l.b16 %v461
      %v786 = vunpack.c.l.b16 %v462
      %v787 = vunpack.c.l.b16 %v463
      %v788 = vunpack.c.l.b16 %v464
      %v789 = vunpack.c.l.b16 %v465
      %v790 = vunpack.c.l.b16 %v466
      %v791 = vunpack.c.l.b16 %v467
      %v792 = vunpack.c.l.b16 %v468
      %v793 = vunpack.c.l.b16 %v469
      %v794 = vunpack.c.l.b16 %v470
      %v795 = vunpack.c.l.b16 %v471
      %v796 = vunpack.c.l.b16 %v472
      %v797 = vunpack.c.l.b16 %v473
      %v798 = vunpack.c.l.b16 %v474
      %v799 = vunpack.c.l.b16 %v475
      %v800 = vunpack.c.l.b16 %v476
      %v801 = vunpack.c.l.b16 %v477
      %v802 = vunpack.c.l.b16 %v478
      %v803 = vunpack.c.l.b16 %v479
      %v804 = vunpack.c.l.b16 %v480
      %v805 = vunpack.c.l.b16 %v481
      %v806 = vunpack.c.l.b16 %v482
      %v807 = vunpack.c.l.b16 %v483
      %v808 = vunpack.c.l.b16 %v484
      %v809 = vunpack.c.l.b16 %v485
      %v810 = vunpack.c.l.b16 %v486
      %v811 = vunpack.c.l.b16 %v487
      %v812 = vunpack.c.l.b16 %v488
      %v813 = vunpack.c.l.b16 %v489
      %v814 = vunpack.c.l.b16 %v490
      %v815 = vunpack.c.l.b16 %v491
      %v816 = vunpack.c.l.b16 %v492
      %v817 = vunpack.c.l.b16 %v493
      %v818 = vunpack.c.l.b16 %v494
      %v819 = vunpack.c.l.b16 %v495
      %v820 = vunpack.c.l.b16 %v496
      %v821 = vunpack.c.l.b16 %v497
      %v822 = vunpack.c.l.b16 %v498
      %v823 = vunpack.c.l.b16 %v499
      %v824 = vunpack.c.l.b16 %v500
      %v825 = vunpack.c.l.b16 %v501
      %v826 = vunpack.c.l.b16 %v502
      %v827 = vunpack.c.l.b16 %v503
      %v828 = vunpack.c.l.b16 %v504
      %v829 = vunpack.c.l.b16 %v505
      %v830 = vunpack.c.l.b16 %v506
      %v831 = vunpack.c.l.b16 %v507
      %v832 = vunpack.c.l.b16 %v508
      %v833 = vunpack.c.l.b16 %v509
      %v834 = vunpack.c.l.b16 %v510
      %v835 = vunpack.c.l.b16 %v511
      %v836 = vunpack.c.l.b16 %v512
      %v837 = vunpack.c.l.b16 %v513
      %v838 = vunpack.c.l.b16 %v514
      %v839 = vunpack.c.l.b16 %v515
      %v840 = vunpack.c.l.b16 %v516
      %v841 = vunpack.c.l.b16 %v517
      %v842 = vunpack.c.l.b16 %v518
      %v843 = vunpack.c.l.b16 %v519
      %v844 = vunpack.c.l.b16 %v520
      %v845 = vunpack.c.l.b16 %v521
      %v846 = vunpack.c.l.b16 %v522
      %v847 = vunpack.c.l.b16 %v523
      %v848 = vunpack.c.l.b16 %v524
      %v849 = vunpack.c.l.b16 %v525
      %v850 = vunpack.c.l.b16 %v526
      %v851 = vunpack.c.l.b16 %v527
      %v852 = vunpack.c.l.b16 %v528
      %v853 = vunpack.c.l.b16 %v529
      %v854 = vunpack.c.l.b16 %v530
      %v855 = vunpack.c.l.b16 %v531
      %v856 = vunpack.c.l.b16 %v532
      %v857 = vunpack.c.l.b16 %v533
      %v858 = vunpack.c.l.b16 %v534
      %v859 = vunpack.c.l.b16 %v535
      %v860 = vunpack.c.l.b16 %v536
      %v861 = vunpack.c.l.b16 %v537
      %v862 = vunpack.c.l.b16 %v538
      %v863 = vunpack.c.l.b16 %v539
      %v864 = vunpack.c.l.b16 %v540
      %v865 = vunpack.c.l.b16 %v541
      %v866 = vunpack.c.l.b16 %v542
      %v867 = vunpack.c.l.b16 %v543
      %v868 = vunpack.c.l.b16 %v544
      %v869 = vunpack.c.l.b16 %v545
      %v870 = vunpack.c.l.b16 %v546
      %v871 = vunpack.c.l.b16 %v547
      %v872 = vpack.c.b16 %v713, %v712
      %v873 = vpack.c.b16 %v715, %v714
      %v874 = vpack.c.b16 %v717, %v716
      %v875 = vpack.c.b16 %v719, %v718
      %v876 = vpack.c.b16 %v721, %v720
      %v877 = vpack.c.b16 %v723, %v722
      %v878 = vpack.c.b16 %v725, %v724
      %v879 = vpack.c.b16 %v727, %v726
      %v880 = vpack.c.b16 %v729, %v728
      %v881 = vpack.c.b16 %v731, %v730
      %v882 = vpack.c.b16 %v733, %v732
      %v883 = vpack.c.b16 %v735, %v734
      %v884 = vpack.c.b16 %v737, %v736
      %v885 = vpack.c.b16 %v739, %v738
      %v886 = vpack.c.b16 %v741, %v740
      %v887 = vpack.c.b16 %v743, %v742
      %v888 = vpack.c.b16 %v745, %v744
      %v889 = vpack.c.b16 %v747, %v746
      %v890 = vpack.c.b16 %v749, %v748
      %v891 = vpack.c.b16 %v751, %v750
      %v892 = vpack.c.b16 %v753, %v752
      %v893 = vpack.c.b16 %v755, %v754
      %v894 = vpack.c.b16 %v757, %v756
      %v895 = vpack.c.b16 %v759, %v758
      %v896 = vpack.c.b16 %v761, %v760
      %v897 = vpack.c.b16 %v763, %v762
      %v898 = vpack.c.b16 %v765, %v764
      %v899 = vpack.c.b16 %v767, %v766
      %v900 = vpack.c.b16 %v769, %v768
      %v901 = vpack.c.b16 %v771, %v770
      %v902 = vpack.c.b16 %v773, %v772
      %v903 = vpack.c.b16 %v775, %v774
      %v904 = vpack.c.b16 %v777, %v776
      %v905 = vpack.c.b16 %v779, %v778
      %v906 = vpack.c.b16 %v781, %v780
      %v907 = vpack.c.b16 %v783, %v782
      %v908 = vpack.c.b16 %v785, %v784
      %v909 = vpack.c.b16 %v787, %v786
      %v910 = vpack.c.b16 %v789, %v788
      %v911 = vpack.c.b16 %v791, %v790
      %v912 = vpack.c.b16 %v793, %v792
      %v913 = vpack.c.b16 %v795, %v794
      %v914 = vpack.c.b16 %v797, %v796
      %v915 = vpack.c.b16 %v799, %v798
      %v916 = vpack.c.b16 %v801, %v800
      %v917 = vpack.c.b16 %v803, %v802
      %v918 = vpack.c.b16 %v805, %v804
      %v919 = vpack.c.b16 %v807, %v806
      %v920 = vpack.c.b16 %v809, %v808
      %v921 = vpack.c.b16 %v811, %v810
      %v922 = vpack.c.b16 %v813, %v812
      %v923 = vpack.c.b16 %v815, %v814
      %v924 = vpack.c.b16 %v817, %v816
      %v925 = vpack.c.b16 %v819, %v818
      %v926 = vpack.c.b16 %v821, %v820
      %v927 = vpack.c.b16 %v823, %v822
      %v928 = vpack.c.b16 %v825, %v824
      %v929 = vpack.c.b16 %v827, %v826
      %v930 = vpack.c.b16 %v829, %v828
      %v931 = vpack.c.b16 %v831, %v830
      %v932 = vpack.c.b16 %v833, %v832
      %v933 = vpack.c.b16 %v835, %v834
      %v934 = vpack.c.b16 %v837, %v836
      %v935 = vpack.c.b16 %v839, %v838
      %v936 = vpack.c.b16 %v841, %v840
      %v937 = vpack.c.b16 %v843, %v842
      %v938 = vpack.c.b16 %v845, %v844
      %v939 = vpack.c.b16 %v847, %v846
      %v940 = vpack.c.b16 %v849, %v848
      %v941 = vpack.c.b16 %v851, %v850
      %v942 = vpack.c.b16 %v853, %v852
      %v943 = vpack.c.b16 %v855, %v854
      %v944 = vpack.c.b16 %v857, %v856
      %v945 = vpack.c.b16 %v859, %v858
      %v946 = vpack.c.b16 %v861, %v860
      %v947 = vpack.c.b16 %v863, %v862
      %v948 = vpack.c.b16 %v865, %v864
      %v949 = vpack.c.b16 %v867, %v866
      %v950 = vpack.c.b16 %v869, %v868
      %v951 = vpack.c.b16 %v871, %v870
      %1032 = vmatpush.bf16.msra.mxu0 %v879
      %1033 = vmatpush.bf16.msra.mxu0 %v878
      %1034 = vmatpush.bf16.msra.mxu0 %v877
      %1035 = vmatpush.bf16.msra.mxu0 %v876
      %1036 = vmatpush.bf16.msra.mxu0 %v875
      %1037 = vmatpush.bf16.msra.mxu0 %v874
      %1038 = vmatpush.bf16.msra.mxu0 %v873
      %1039 = vmatpush.bf16.msra.mxu0 %v872
      %1040 = vmatmul.bf16.gmra.mxu0 %v378
      %v1041 = vpop.f32.mrf.mxu0
      %v1042 = vadd.f32 %v550, %v1041
      %v1043 = vpop.f32.mrf.mxu0
      %1044 = vdwg.mxu0
      %1045 = vmatpush.bf16.msra.mxu0 %v887
      %1046 = vmatpush.bf16.msra.mxu0 %v886
      %1047 = vmatpush.bf16.msra.mxu0 %v885
      %1048 = vmatpush.bf16.msra.mxu0 %v884
      %1049 = vmatpush.bf16.msra.mxu0 %v883
      %1050 = vmatpush.bf16.msra.mxu0 %v882
      %1051 = vmatpush.bf16.msra.mxu0 %v881
      %1052 = vmatpush.bf16.msra.mxu0 %v880
      %1053 = vmatmul.bf16.gmra.mxu0 %v379
      %v1054 = vpop.f32.mrf.mxu0
      %v1055 = vadd.f32 %v1042, %v1054
      %v1056 = vpop.f32.mrf.mxu0
      %1057 = vdwg.mxu0
      %1058 = vmatpush.bf16.msra.mxu0 %v895
      %1059 = vmatpush.bf16.msra.mxu0 %v894
      %1060 = vmatpush.bf16.msra.mxu0 %v893
      %1061 = vmatpush.bf16.msra.mxu0 %v892
      %1062 = vmatpush.bf16.msra.mxu0 %v891
      %1063 = vmatpush.bf16.msra.mxu0 %v890
      %1064 = vmatpush.bf16.msra.mxu0 %v889
      %1065 = vmatpush.bf16.msra.mxu0 %v888
      %1066 = vmatmul.bf16.gmra.mxu0 %v380
      %v1067 = vpop.f32.mrf.mxu0
      %v1068 = vadd.f32 %v1055, %v1067
      %v1069 = vpop.f32.mrf.mxu0
      %1070 = vdwg.mxu0
      %1071 = vmatpush.bf16.msra.mxu0 %v903
      %1072 = vmatpush.bf16.msra.mxu0 %v902
      %1073 = vmatpush.bf16.msra.mxu0 %v901
      %1074 = vmatpush.bf16.msra.mxu0 %v900
      %1075 = vmatpush.bf16.msra.mxu0 %v899
      %1076 = vmatpush.bf16.msra.mxu0 %v898
      %1077 = vmatpush.bf16.msra.mxu0 %v897
      %1078 = vmatpush.bf16.msra.mxu0 %v896
      %1079 = vmatmul.bf16.gmra.mxu0 %v381
      %v1080 = vpop.f32.mrf.mxu0
      %v1081 = vadd.f32 %v1068, %v1080
      %v1082 = vpop.f32.mrf.mxu0
      %1083 = vdwg.mxu0
      %1084 = vmatpush.bf16.msra.mxu0 %v911
      %1085 = vmatpush.bf16.msra.mxu0 %v910
      %1086 = vmatpush.bf16.msra.mxu0 %v909
      %1087 = vmatpush.bf16.msra.mxu0 %v908
      %1088 = vmatpush.bf16.msra.mxu0 %v907
      %1089 = vmatpush.bf16.msra.mxu0 %v906
      %1090 = vmatpush.bf16.msra.mxu0 %v905
      %1091 = vmatpush.bf16.msra.mxu0 %v904
      %1092 = vmatmul.bf16.gmra.mxu0 %v382
      %v1093 = vpop.f32.mrf.mxu0
      %v1094 = vadd.f32 %v1081, %v1093
      %v1095 = vpop.f32.mrf.mxu0
      %1096 = vdwg.mxu0
      %1097 = vmatpush.bf16.msra.mxu0 %v919
      %1098 = vmatpush.bf16.msra.mxu0 %v918
      %1099 = vmatpush.bf16.msra.mxu0 %v917
      %1100 = vmatpush.bf16.msra.mxu0 %v916
      %1101 = vmatpush.bf16.msra.mxu0 %v915
      %1102 = vmatpush.bf16.msra.mxu0 %v914
      %1103 = vmatpush.bf16.msra.mxu0 %v913
      %1104 = vmatpush.bf16.msra.mxu0 %v912
      %1105 = vmatmul.bf16.gmra.mxu0 %v383
      %v1106 = vpop.f32.mrf.mxu0
      %v1107 = vadd.f32 %v1094, %v1106
      %v1108 = vpop.f32.mrf.mxu0
      %1109 = vdwg.mxu0
      %1110 = vmatpush.bf16.msra.mxu0 %v927
      %1111 = vmatpush.bf16.msra.mxu0 %v926
      %1112 = vmatpush.bf16.msra.mxu0 %v925
      %1113 = vmatpush.bf16.msra.mxu0 %v924
      %1114 = vmatpush.bf16.msra.mxu0 %v923
      %1115 = vmatpush.bf16.msra.mxu0 %v922
      %1116 = vmatpush.bf16.msra.mxu0 %v921
      %1117 = vmatpush.bf16.msra.mxu0 %v920
      %1118 = vmatmul.bf16.gmra.mxu0 %v384
      %v1119 = vpop.f32.mrf.mxu0
      %v1120 = vadd.f32 %v1107, %v1119
      %v1121 = vpop.f32.mrf.mxu0
      %1122 = vdwg.mxu0
      %1123 = vmatpush.bf16.msra.mxu0 %v935
      %1124 = vmatpush.bf16.msra.mxu0 %v934
      %1125 = vmatpush.bf16.msra.mxu0 %v933
      %1126 = vmatpush.bf16.msra.mxu0 %v932
      %1127 = vmatpush.bf16.msra.mxu0 %v931
      %1128 = vmatpush.bf16.msra.mxu0 %v930
      %1129 = vmatpush.bf16.msra.mxu0 %v929
      %1130 = vmatpush.bf16.msra.mxu0 %v928
      %1131 = vmatmul.bf16.gmra.mxu0 %v385
      %v1132 = vpop.f32.mrf.mxu0
      %v1133 = vadd.f32 %v1120, %v1132
      %v1134 = vpop.f32.mrf.mxu0
      %1135 = vdwg.mxu0
      %1136 = vmatpush.bf16.msra.mxu0 %v943
      %1137 = vmatpush.bf16.msra.mxu0 %v942
      %1138 = vmatpush.bf16.msra.mxu0 %v941
      %1139 = vmatpush.bf16.msra.mxu0 %v940
      %1140 = vmatpush.bf16.msra.mxu0 %v939
      %1141 = vmatpush.bf16.msra.mxu0 %v938
      %1142 = vmatpush.bf16.msra.mxu0 %v937
      %1143 = vmatpush.bf16.msra.mxu0 %v936
      %1144 = vmatmul.bf16.gmra.mxu0 %v386
      %v1145 = vpop.f32.mrf.mxu0
      %v1146 = vadd.f32 %v1133, %v1145
      %v1147 = vpop.f32.mrf.mxu0
      %1148 = vdwg.mxu0
      %1149 = vmatpush.bf16.msra.mxu0 %v951
      %1150 = vmatpush.bf16.msra.mxu0 %v950
      %1151 = vmatpush.bf16.msra.mxu0 %v949
      %1152 = vmatpush.bf16.msra.mxu0 %v948
      %1153 = vmatpush.bf16.msra.mxu0 %v947
      %1154 = vmatpush.bf16.msra.mxu0 %v946
      %1155 = vmatpush.bf16.msra.mxu0 %v945
      %1156 = vmatpush.bf16.msra.mxu0 %v944
      %1157 = vmatmul.bf16.gmra.mxu0 %v387
      %v1158 = vpop.f32.mrf.mxu0
      %v1159 = vadd.f32 %v1146, %v1158
      %v1160 = vpop.f32.mrf.mxu0
      %1161 = vdwg.mxu0
      %1162 = vst [vmem:[#allocation6] sm:$0x3] %v1159
    $region33: #{forward.1} parent=1 // pred_fallthru
      _
    // Predicated region
    $region34: #{forward.1} parent=1 // pred_check
      _
    $region35: #{forward.1} parent=1 // pred_check_branch
      %1164 = sbr.rel (0) target = $region37
    $region36: #{forward.1} parent=1 // pred_region
      %1166 = vsyncadd [#allocation5], 0
      %s1168 = sshll.u32 [#allocation6], 4
      %s1169 = int_to_ptr.vmem [resolvable:$true] %s1168
      %s1170 = sshll.u32 %s5, 4
      %s1171 = int_to_ptr.hbm [resolvable:$true] %s1170
      %1173 = dma.vmem_to_hbm [thread:$0]  %s1169, 32, %s1171, [#allocation5]
    $region37: #{forward.1} parent=1 // pred_fallthru
      _
    // Predicated region
    $region38: #{forward.1} parent=1 // pred_check
      _
    $region39: #{forward.1} parent=1 // pred_check_branch
      %1175 = sbr.rel (0) target = $region41
    $region40: #{forward.1} parent=1 // pred_region
      %1177 = dma.done [#allocation5], 32
    $region41: #{forward.1} parent=1 // pred_fallthru
      _
    %1178 = vsyncpa [#allocation4], 1
    %1179 = vsyncpa [#allocation5], 1

</llo_original>
